<compile_context>
chip_gen: v5e
topology: v5e:2x2
jax: 0.10.0
libtpu: 0.0.40
codegen_flags: <defaults>
</compile_context>

<pallas_src>
import functools
import math

import jax
import jax.numpy as jnp
from jax import lax
from jax.experimental import pallas as pl
from jax.experimental.pallas import tpu as pltpu

_LANE = 128


def _round_up(x, m):
    return ((x + m - 1) // m) * m


def _pad_to(x, shape, dtype=None):
    pads = [(0, t - s) for s, t in zip(x.shape, shape)]
    y = jnp.pad(x, pads)
    return y.astype(dtype) if dtype is not None else y


def _vmem_spec():
    return pl.BlockSpec(memory_space=pltpu.MemorySpace.VMEM)


# ---------------------------------------------------------------------------
# Shared in-kernel encode math (values already loaded from VMEM refs).
# ---------------------------------------------------------------------------

def _encode_math(ids, mask, inv_len, word_emb, w_enc, b_enc,
                 w_pool, b_pool, w_reduce, b_reduce,
                 *, pooling_mode, normalize, bsz, seq_len):
    """Synthetic-BERT encode + pooling (+ reduce) (+ L2 normalize).

    ids:      (N, 1) int32 token ids (N = bsz*seq_len for 'mean', bsz for cls)
    mask:     (bsz, seq_len) f32 attention mask      ('mean' only)
    inv_len:  (bsz, 1) f32, 1/clamp(seqlen, 1)       ('mean' only)
    word_emb: (V, H)   bf16   (unpadded - keeps gather bytes minimal)
    w_enc:    (H, Hp)  bf16 ; b_enc (1, Hp) f32  (pad cols zero)
    w_pool:   (Hp, Hp) bf16 ; b_pool (1, Hp) f32
    w_reduce: (Hp, Ep) bf16 ; b_reduce (1, Ep) f32
    """
    vocab = word_emb.shape[0]
    n = ids.shape[0]

    # In-kernel "gather" as a one-hot MXU matmul (exact for 0/1 one-hot).
    iota = lax.broadcasted_iota(jnp.int32, (n, vocab), 1)
    onehot = jnp.where(ids == iota, 1.0, 0.0).astype(jnp.bfloat16)
    tok = jnp.dot(onehot, word_emb, preferred_element_type=jnp.float32)  # (N, H)

    # Encoder: tanh(x @ W + b).  bf16 MXU operands, f32 accumulate/epilogue.
    h = jnp.tanh(
        jnp.dot(tok.astype(jnp.bfloat16), w_enc,
                preferred_element_type=jnp.float32) + b_enc)             # (N, Hp)

    if pooling_mode == "mean":
        seq = h.reshape(bsz, seq_len, h.shape[-1])                       # (B,S,Hp)
        # Masked sum on VPU/XLU slots (they're idle); no M=1 MXU contraction.
        summed = jnp.sum(seq * mask[:, :, None], axis=1)                 # (B, Hp)
        emb = summed * inv_len                                           # 1/len precomputed
    elif pooling_mode == "linear":
        emb = jnp.tanh(
            jnp.dot(h.astype(jnp.bfloat16), w_pool,
                    preferred_element_type=jnp.float32) + b_pool)        # pooled_output
    else:  # "cls"
        emb = h

    if w_reduce is not None:
        # Mean-then-reduce reorder on 'mean' path (affine reduce + linear mean
        # => identical to torch's reduce-then-mean up to rounding).
        emb = jnp.dot(emb.astype(jnp.bfloat16), w_reduce,
                      preferred_element_type=jnp.float32) + b_reduce

    if normalize:
        # F.normalize: x / max(||x||, 1e-12) == x * rsqrt(max(||x||^2, 1e-24))
        ssq = jnp.sum(emb * emb, axis=-1, keepdims=True)
        emb = emb * lax.rsqrt(jnp.maximum(ssq, 1e-24))
    return emb


# ---------------------------------------------------------------------------
# Fused kernels (single block; all operands are tiny and live in VMEM).
# ---------------------------------------------------------------------------

def _fused_encode_kernel(*refs, pooling_mode, use_pool, use_reduce, normalize,
                         bsz, seq_len):
    it = iter(refs)
    ids = next(it)[...]
    mask = next(it)[...] if pooling_mode == "mean" else None
    inv_len = next(it)[...] if pooling_mode == "mean" else None
    word_emb = next(it)[...]
    w_enc = next(it)[...]
    b_enc = next(it)[...]
    w_pool = next(it)[...] if use_pool else None
    b_pool = next(it)[...] if use_pool else None
    w_reduce = next(it)[...] if use_reduce else None
    b_reduce = next(it)[...] if use_reduce else None
    o_ref = next(it)

    emb = _encode_math(ids, mask, inv_len, word_emb, w_enc, b_enc,
                       w_pool, b_pool, w_reduce, b_reduce,
                       pooling_mode=pooling_mode, normalize=normalize,
                       bsz=bsz, seq_len=seq_len)
    o_ref[...] = emb.astype(o_ref.dtype)


def _fused_cosine_kernel(*refs, pooling_mode, use_pool, use_reduce,
                         return_matrix, bsz_a, bsz_b, seq_len):
    it = iter(refs)
    ids = next(it)[...]          # concatenated a+b
    mask = next(it)[...] if pooling_mode == "mean" else None
    inv_len = next(it)[...] if pooling_mode == "mean" else None
    word_emb = next(it)[...]
    w_enc = next(it)[...]
    b_enc = next(it)[...]
    w_pool = next(it)[...] if use_pool else None
    b_pool = next(it)[...] if use_pool else None
    w_reduce = next(it)[...] if use_reduce else None
    b_reduce = next(it)[...] if use_reduce else None
    o_ref = next(it)

    # ONE encode pass over the concatenated batch, then split.
    emb = _encode_math(ids, mask, inv_len, word_emb, w_enc, b_enc,
                       w_pool, b_pool, w_reduce, b_reduce,
                       pooling_mode=pooling_mode, normalize=True,
                       bsz=bsz_a + bsz_b, seq_len=seq_len)
    emb_a = emb[:bsz_a]
    emb_b = emb[bsz_a:]

    if return_matrix:
        # a @ b.T without an explicit XLU transpose.
        sim = lax.dot_general(emb_a, emb_b,
                              dimension_numbers=(((1,), (1,)), ((), ())),
                              preferred_element_type=jnp.float32)   # (Ba, Bb)
        o_ref[...] = sim.astype(o_ref.dtype)
    else:
        sim = jnp.sum(emb_a * emb_b, axis=-1, keepdims=True)        # (Ba, 1)
        # Lane-dense store: broadcast across 128 lanes, wrapper takes col 0.
        o_ref[...] = jnp.broadcast_to(sim, o_ref.shape).astype(o_ref.dtype)


# ---------------------------------------------------------------------------
# BaseModel in JAX, backed by the fused Pallas kernels above.
# ---------------------------------------------------------------------------

class BaseModelPallas:
    def __init__(self, key, vocab_size=64, hidden_size=32, output_emb_size=16,
                 pad_token_id=0):
        self.pad_token_id = pad_token_id
        self.vocab_size = vocab_size
        self.hidden_size = hidden_size
        self.output_emb_size = output_emb_size if output_emb_size else 0

        hp = _round_up(hidden_size, _LANE)
        ep = _round_up(self.output_emb_size, _LANE) if self.output_emb_size else hp
        self.hp, self.ep = hp, ep

        k = jax.random.split(key, 6)
        scale = 0.05
        # Logical (torch-equivalent) f32 parameters, weights stored (in, out).
        self.word_emb = scale * jax.random.normal(
            k[0], (vocab_size, hidden_size), jnp.float32)
        self.w_enc = scale * jax.random.normal(
            k[1], (hidden_size, hidden_size), jnp.float32)
        self.b_enc = jnp.zeros((1, hidden_size), jnp.float32)
        self.w_pool = scale * jax.random.normal(
            k[2], (hidden_size, hidden_size), jnp.float32)
        self.b_pool = jnp.zeros((1, hidden_size), jnp.float32)
        if self.output_emb_size > 0:
            self.w_reduce = scale * jax.random.normal(
                k[3], (hidden_size, self.output_emb_size), jnp.float32)
            self.b_reduce = scale * jax.random.normal(
                k[4], (1, self.output_emb_size), jnp.float32)

        # Kernel operands: bf16 MXU weights.  K (in) dims stay logical where
        # the producer is already narrow; N (out) dims are lane-padded to 128
        # with zeros so pad lanes stay exactly zero through tanh / matmuls.
        self.word_emb_k = self.word_emb.astype(jnp.bfloat16)            # (V, H)
        self.w_enc_k = _pad_to(self.w_enc, (hidden_size, hp), jnp.bfloat16)
        self.b_enc_k = _pad_to(self.b_enc, (1, hp))
        self.w_pool_k = _pad_to(self.w_pool, (hp, hp), jnp.bfloat16)
        self.b_pool_k = _pad_to(self.b_pool, (1, hp))
        if self.output_emb_size > 0:
            self.w_reduce_k = _pad_to(self.w_reduce, (hp, ep), jnp.bfloat16)
            self.b_reduce_k = _pad_to(self.b_reduce, (1, ep))

    # ---- glue: ids / mask prep (no token tensor ever materialized) ---------
    def _prep(self, input_ids, attention_mask, pooling_mode):
        input_ids = jnp.asarray(input_ids, jnp.int32)
        b, s = input_ids.shape
        if pooling_mode == "mean":
            if attention_mask is None:
                mask = (input_ids != self.pad_token_id).astype(jnp.float32)
            else:
                mask = jnp.asarray(attention_mask).astype(jnp.float32)
            # 1/seqlen computed in the wrapper; clamp fixes all-padding NaN.
            inv_len = 1.0 / jnp.maximum(jnp.sum(mask, axis=-1, keepdims=True), 1.0)
            return input_ids.reshape(b * s, 1), mask, inv_len
        if pooling_mode in ("linear", "cls"):
            return input_ids[:, :1], None, None   # only CLS token is consumed
        raise NotImplementedError(pooling_mode)

    def _weight_args(self, pooling_mode):
        args = [self.word_emb_k, self.w_enc_k, self.b_enc_k]
        if pooling_mode == "linear":
            args += [self.w_pool_k, self.b_pool_k]
        if self.output_emb_size > 0:
            args += [self.w_reduce_k, self.b_reduce_k]
        return args

    def _cost_estimate(self, pooling_mode, n_tok, n_rows, args, out_shape):
        hp, ep, h, v = self.hp, self.ep, self.hidden_size, self.vocab_size
        flops = 2 * n_tok * v * h          # one-hot gather matmul
        flops += 2 * n_tok * h * hp        # encoder
        trans = n_tok * hp                 # tanh
        if pooling_mode == "linear":
            flops += 2 * n_rows * hp * hp
            trans += n_rows * hp
        if self.output_emb_size > 0:
            flops += 2 * n_rows * hp * ep
        trans += n_rows                    # rsqrt epilogue
        nbytes = sum(int(a.size) * a.dtype.itemsize for a in args)
        nbytes += int(math.prod(out_shape)) * 4
        return pl.CostEstimate(flops=int(flops), transcendentals=int(trans),
                               bytes_accessed=int(nbytes))

    # ---- public API --------------------------------------------------------
    def encode(self, input_ids, attention_mask=None, pooling_mode="linear",
               normalize_to_unit=False):
        use_reduce = self.output_emb_size > 0
        use_pool = pooling_mode == "linear"
        out_dim = self.output_emb_size if use_reduce else self.hidden_size
        out_pad = self.ep if use_reduce else self.hp

        b, s = input_ids.shape
        ids, mask, inv_len = self._prep(input_ids, attention_mask, pooling_mode)
        args = [ids]
        if pooling_mode == "mean":
            args += [mask, inv_len]
        args += self._weight_args(pooling_mode)

        n_tok = ids.shape[0]
        kernel = functools.partial(
            _fused_encode_kernel, pooling_mode=pooling_mode, use_pool=use_pool,
            use_reduce=use_reduce, normalize=normalize_to_unit, bsz=b, seq_len=s)
        emb_p = pl.pallas_call(
            kernel,
            out_shape=jax.ShapeDtypeStruct((b, out_pad), jnp.float32),
            in_specs=[_vmem_spec()] * len(args),
            out_specs=_vmem_spec(),
            cost_estimate=self._cost_estimate(pooling_mode, n_tok, b, args,
                                              (b, out_pad)),
        )(*args)
        return emb_p[:, :out_dim]   # drop zero pad lanes

    def cosine_similarity(self, input_ids, pair_input_ids, attention_mask=None,
                          pair_attention_mask=None, pooling_mode="linear",
                          return_matrix=False):
        use_reduce = self.output_emb_size > 0
        use_pool = pooling_mode == "linear"
        ba, s = input_ids.shape
        bb, sb = pair_input_ids.shape

        if pooling_mode == "mean" and s != sb:
            # Fallback: different seq lengths can't share one concatenated pass.
            emb = self.encode(input_ids, attention_mask, "mean", True)
            pair = self.encode(pair_input_ids, pair_attention_mask, "mean", True)
            return emb @ pair.T if return_matrix else jnp.sum(emb * pair, axis=-1)

        ids_a, mask_a, inv_a = self._prep(input_ids, attention_mask, pooling_mode)
        ids_b, mask_b, inv_b = self._prep(pair_input_ids, pair_attention_mask,
                                          pooling_mode)
        ids = jnp.concatenate([ids_a, ids_b], axis=0)
        args = [ids]
        if pooling_mode == "mean":
            args += [jnp.concatenate([mask_a, mask_b], axis=0),
                     jnp.concatenate([inv_a, inv_b], axis=0)]
        args += self._weight_args(pooling_mode)

        out_shape = (ba, bb) if return_matrix else (ba, _LANE)
        kernel = functools.partial(
            _fused_cosine_kernel, pooling_mode=pooling_mode, use_pool=use_pool,
            use_reduce=use_reduce, return_matrix=return_matrix,
            bsz_a=ba, bsz_b=bb, seq_len=s)
        sim_p = pl.pallas_call(
            kernel,
            out_shape=jax.ShapeDtypeStruct(out_shape, jnp.float32),
            in_specs=[_vmem_spec()] * len(args),
            out_specs=_vmem_spec(),
            cost_estimate=self._cost_estimate(pooling_mode, ids.shape[0],
                                              ba + bb, args, out_shape),
        )(*args)
        return sim_p if return_matrix else sim_p[:, 0]


# ---------------------------------------------------------------------------
# Pure-JAX f32 reference (torch-order math) for correctness check.
# ---------------------------------------------------------------------------

def _ref_encode(model, input_ids, pooling_mode, normalize_to_unit):
    attention_mask = (input_ids != model.pad_token_id).astype(jnp.float32)
    tok = model.word_emb[input_ids]
    seq = jnp.tanh(tok @ model.w_enc + model.b_enc)
    pooled = jnp.tanh(seq[:, 0, :] @ model.w_pool + model.b_pool)
    if pooling_mode == "linear":
        emb = pooled
        if model.output_emb_size > 0:
            emb = emb @ model.w_reduce + model.b_reduce
    elif pooling_mode == "cls":
        emb = seq[:, 0, :]
        if model.output_emb_size > 0:
            emb = emb @ model.w_reduce + model.b_reduce
    elif pooling_mode == "mean":
        if model.output_emb_size > 0:
            seq = seq @ model.w_reduce + model.b_reduce   # torch order
        m = attention_mask[:, :, None]
        emb = jnp.sum(seq * m, axis=1) / jnp.sum(m, axis=1)
    else:
        raise NotImplementedError
    if normalize_to_unit:
        emb = emb / jnp.maximum(
            jnp.sqrt(jnp.sum(emb * emb, axis=-1, keepdims=True)), 1e-12)
    return emb


if __name__ == "__main__":
    key = jax.random.PRNGKey(0)
    k_model, k_a, k_b = jax.random.split(key, 3)

    batch, seq_len, vocab = 2, 8, 64
    model = BaseModelPallas(k_model, vocab_size=vocab, hidden_size=32,
                            output_emb_size=16, pad_token_id=0)

    input_ids = jax.random.randint(k_a, (batch, seq_len), 1, vocab, jnp.int32)
    pair_input_ids = jax.random.randint(k_b, (batch, seq_len), 1, vocab, jnp.int32)
    # make some padding positions to exercise the masked-mean path
    input_ids = input_ids.at[:, -2:].set(0)
    pair_input_ids = pair_input_ids.at[:, -1:].set(0)

    # Run the fused Pallas paths.
    emb_mean = model.encode(input_ids, pooling_mode="mean", normalize_to_unit=True)
    emb_lin = model.encode(input_ids, pooling_mode="linear", normalize_to_unit=True)
    sim_vec = model.cosine_similarity(input_ids, pair_input_ids,
                                      pooling_mode="mean", return_matrix=False)
    sim_mat = model.cosine_similarity(input_ids, pair_input_ids,
                                      pooling_mode="cls", return_matrix=True)
    jax.block_until_ready((emb_mean, emb_lin, sim_vec, sim_mat))

    # Sanity check against the pure-JAX f32 (torch-order) reference.
    # Tolerance is loosened (bf16 MXU operands vs. f32 reference).
    TOL = 1e-2
    ref_mean = _ref_encode(model, input_ids, "mean", True)
    ref_lin = _ref_encode(model, input_ids, "linear", True)
    assert jnp.allclose(emb_mean, ref_mean, atol=TOL), "mean pooling mismatch"
    assert jnp.allclose(emb_lin, ref_lin, atol=TOL), "linear pooling mismatch"

    ref_a = _ref_encode(model, input_ids, "mean", True)
    ref_b = _ref_encode(model, pair_input_ids, "mean", True)
    assert jnp.allclose(sim_vec, jnp.sum(ref_a * ref_b, axis=-1), atol=TOL)
    ref_a = _ref_encode(model, input_ids, "cls", True)
    ref_b = _ref_encode(model, pair_input_ids, "cls", True)
    assert jnp.allclose(sim_mat, ref_a @ ref_b.T, atol=TOL)

    print("KERNEL_OK")
</pallas_src>

<mosaic_0001>
module attributes {stable_mosaic.version = 11 : i64} {
  func.func @_fused_encode_kernel(%arg0: memref<16x1xi32, #tpu.memory_space<vmem>>, %arg1: memref<2x8xf32, #tpu.memory_space<vmem>>, %arg2: memref<2x1xf32, #tpu.memory_space<vmem>>, %arg3: memref<64x32xbf16, #tpu.memory_space<vmem>>, %arg4: memref<32x128xbf16, #tpu.memory_space<vmem>>, %arg5: memref<1x128xf32, #tpu.memory_space<vmem>>, %arg6: memref<128x128xbf16, #tpu.memory_space<vmem>>, %arg7: memref<1x128xf32, #tpu.memory_space<vmem>>, %arg8: memref<2x128xf32, #tpu.memory_space<vmem>>) attributes {dimension_semantics = [], scalar_prefetch = 0 : i64, scratch_operands = 0 : i64, tpu.core_type = #tpu.core_type<tc>} {
    %c0 = arith.constant 0 : index
    %c0_0 = arith.constant 0 : index
    %0 = vector.load %arg0[%c0, %c0_0] : memref<16x1xi32, #tpu.memory_space<vmem>>, vector<16x1xi32>
    %c0_1 = arith.constant 0 : index
    %c0_2 = arith.constant 0 : index
    %1 = vector.load %arg1[%c0_1, %c0_2] : memref<2x8xf32, #tpu.memory_space<vmem>>, vector<2x8xf32>
    %c0_3 = arith.constant 0 : index
    %c0_4 = arith.constant 0 : index
    %2 = vector.load %arg2[%c0_3, %c0_4] : memref<2x1xf32, #tpu.memory_space<vmem>>, vector<2x1xf32>
    %c0_5 = arith.constant 0 : index
    %c0_6 = arith.constant 0 : index
    %3 = vector.load %arg3[%c0_5, %c0_6] : memref<64x32xbf16, #tpu.memory_space<vmem>>, vector<64x32xbf16>
    %c0_7 = arith.constant 0 : index
    %c0_8 = arith.constant 0 : index
    %4 = vector.load %arg4[%c0_7, %c0_8] : memref<32x128xbf16, #tpu.memory_space<vmem>>, vector<32x128xbf16>
    %c0_9 = arith.constant 0 : index
    %c0_10 = arith.constant 0 : index
    %5 = vector.load %arg5[%c0_9, %c0_10] : memref<1x128xf32, #tpu.memory_space<vmem>>, vector<1x128xf32>
    %c0_11 = arith.constant 0 : index
    %c0_12 = arith.constant 0 : index
    %6 = vector.load %arg6[%c0_11, %c0_12] : memref<128x128xbf16, #tpu.memory_space<vmem>>, vector<128x128xbf16>
    %c0_13 = arith.constant 0 : index
    %c0_14 = arith.constant 0 : index
    %7 = vector.load %arg7[%c0_13, %c0_14] : memref<1x128xf32, #tpu.memory_space<vmem>>, vector<1x128xf32>
    %8 = tpu.iota {dimensions = array<i32: 1>} : vector<16x64xi32>
    %9 = vector.broadcast %0 : vector<16x1xi32> to vector<16x64xi32>
    %10 = arith.cmpi eq, %9, %8 : vector<16x64xi32>
    %cst = arith.constant 1.000000e+00 : f32
    %cst_15 = arith.constant 0.000000e+00 : f32
    %11 = vector.broadcast %cst : f32 to vector<16x64xf32>
    %12 = vector.broadcast %cst_15 : f32 to vector<16x64xf32>
    %13 = arith.select %10, %11, %12 : vector<16x64xi1>, vector<16x64xf32>
    %14 = arith.truncf %13 : vector<16x64xf32> to vector<16x64xbf16>
    %cst_16 = arith.constant dense<0.000000e+00> : vector<16x32xf32>
    %15 = tpu.matmul %14, %3, %cst_16 {dimension_numbers = #tpu.dot_dimension_numbers<[1], [0], [0], [1], [0, 0, 1, 1], [], []>} : vector<16x64xbf16>, vector<64x32xbf16>, vector<16x32xf32> -> vector<16x32xf32>
    %16 = arith.truncf %15 : vector<16x32xf32> to vector<16x32xbf16>
    %cst_17 = arith.constant dense<0.000000e+00> : vector<16x128xf32>
    %17 = tpu.matmul %16, %4, %cst_17 {dimension_numbers = #tpu.dot_dimension_numbers<[1], [0], [0], [1], [0, 0, 1, 1], [], []>} : vector<16x32xbf16>, vector<32x128xbf16>, vector<16x128xf32> -> vector<16x128xf32>
    %18 = vector.broadcast %5 : vector<1x128xf32> to vector<16x128xf32>
    %19 = arith.addf %17, %18 : vector<16x128xf32>
    %20 = math.tanh %19 : vector<16x128xf32>
    %21 = vector.shape_cast %20 : vector<16x128xf32> to vector<2x8x128xf32>
    %22 = vector.shape_cast %1 : vector<2x8xf32> to vector<2x8x1xf32>
    %23 = vector.broadcast %22 : vector<2x8x1xf32> to vector<2x8x128xf32>
    %24 = arith.mulf %21, %23 : vector<2x8x128xf32>
    %cst_18 = arith.constant dense<0.000000e+00> : vector<2x128xf32>
    %25 = vector.multi_reduction <add>, %24, %cst_18 [1] : vector<2x8x128xf32> to vector<2x128xf32>
    %26 = vector.broadcast %2 : vector<2x1xf32> to vector<2x128xf32>
    %27 = arith.mulf %25, %26 : vector<2x128xf32>
    %28 = arith.truncf %27 : vector<2x128xf32> to vector<2x128xbf16>
    %cst_19 = arith.constant dense<0.000000e+00> : vector<2x128xf32>
    %29 = tpu.matmul %28, %6, %cst_19 {dimension_numbers = #tpu.dot_dimension_numbers<[1], [0], [0], [1], [0, 0, 1, 1], [], []>} : vector<2x128xbf16>, vector<128x128xbf16>, vector<2x128xf32> -> vector<2x128xf32>
    %30 = vector.broadcast %7 : vector<1x128xf32> to vector<2x128xf32>
    %31 = arith.addf %29, %30 : vector<2x128xf32>
    %32 = arith.mulf %31, %31 : vector<2x128xf32>
    %cst_20 = arith.constant dense<0.000000e+00> : vector<2xf32>
    %33 = vector.multi_reduction <add>, %32, %cst_20 [1] : vector<2x128xf32> to vector<2xf32>
    %34 = vector.shape_cast %33 : vector<2xf32> to vector<2x1xf32>
    %cst_21 = arith.constant 1.000000e-24 : f32
    %35 = vector.broadcast %cst_21 : f32 to vector<2x1xf32>
    %36 = arith.maximumf %34, %35 : vector<2x1xf32>
    %37 = math.rsqrt %36 : vector<2x1xf32>
    %38 = vector.broadcast %37 : vector<2x1xf32> to vector<2x128xf32>
    %39 = arith.mulf %31, %38 : vector<2x128xf32>
    %c0_22 = arith.constant 0 : index
    %c0_23 = arith.constant 0 : index
    %40 = vector.load %arg8[%c0_22, %c0_23] : memref<2x128xf32, #tpu.memory_space<vmem>>, vector<2x128xf32>
    tpu.vector_store %arg8[%c0_22, %c0_23], %39 {strides = array<i32>} : memref<2x128xf32, #tpu.memory_space<vmem>>, vector<2x128xf32>,
    return
  }
}

</mosaic_0001>

<llo_original>
// kernel: tpu_custom_call.1
$region0: #{tpu_custom_call.1}
  #allocation0 [shape = 'u32[]', space=smem, size = 0x4, offset = 0x4, fixed_abs, tag = 'smem constant byte address 0x4 - core index']
  #allocation1 [shape = 'u32[72,128]{1,0:T(1,128)}', space=vmem, size = 0x9000, scoped, tag = 'internal scratch']
  %s0 = inlined_call_operand.vmem [shape: s32[16,1], index: 0, kind: input, shape index: {}]
  %s1 = inlined_call_operand.vmem [shape: f32[2,8], index: 1, kind: input, shape index: {}]
  %s2 = inlined_call_operand.vmem [shape: f32[2,1], index: 2, kind: input, shape index: {}]
  %s3 = inlined_call_operand.vmem [shape: bf16[64,32], index: 3, kind: input, shape index: {}]
  %s4 = inlined_call_operand.hbm [shape: bf16[32,128], index: 4, kind: input, shape index: {}]
  %s5 = inlined_call_operand.vmem [shape: f32[1,128], index: 5, kind: input, shape index: {}]
  %s6 = inlined_call_operand.vmem [shape: bf16[128,128], index: 6, kind: input, shape index: {}]
  %s7 = inlined_call_operand.vmem [shape: f32[1,128], index: 7, kind: input, shape index: {}]
  %s8 = inlined_call_operand.hbm [shape: f32[2,128], index: 8, kind: output, shape index: {}]
  %s9 = sld [smem:[#allocation0]]
  $region46: #{tpu_custom_call.1} parent=0
    _
  %s11 = ssub.s32 1, %s9
  %s12 = scalar_select 0, %s11, %s9
  $region1: #{tpu_custom_call.1} parent=0
    #allocation2 [shape = 'u8[8192]{0}', space=vmem, size = 0x2000, scoped, tag = 'input window, operand 4, single buffered']
    #allocation3 [shape = 's32[1]{0}', space=sflag, size = 0x4, scoped, tag = 'scoped memory for tpu_custom_call.1']
    #allocation4 [shape = 's32[1]{0}', space=sflag, size = 0x4, scoped, tag = 'scoped memory for tpu_custom_call.1']
    #allocation5 [shape = 'u8[1024]{0}', space=vmem, size = 0x400, scoped, tag = 'output window, operand 0, single buffered']
    %13 = vsyncpa [#allocation3], 0
    %14 = vsyncpa [#allocation4], 0
    // Predicated region
    $region2: #{tpu_custom_call.1} parent=1 // pred_check
      _
    $region3: #{tpu_custom_call.1} parent=1 // pred_check_branch
      %16 = sbr.rel (0) target = $region5
    $region4: #{tpu_custom_call.1} parent=1 // pred_region
      _
    $region5: #{tpu_custom_call.1} parent=1 // pred_fallthru
      _
    // Predicated region
    $region6: #{tpu_custom_call.1} parent=1 // pred_check
      _
    $region7: #{tpu_custom_call.1} parent=1 // pred_check_branch
      %18 = sbr.rel (0) target = $region9
    $region8: #{tpu_custom_call.1} parent=1 // pred_region
      _
    $region9: #{tpu_custom_call.1} parent=1 // pred_fallthru
      _
    // Predicated region
    $region10: #{tpu_custom_call.1} parent=1 // pred_check
      _
    $region11: #{tpu_custom_call.1} parent=1 // pred_check_branch
      %20 = sbr.rel (0) target = $region13
    $region12: #{tpu_custom_call.1} parent=1 // pred_region
      _
    $region13: #{tpu_custom_call.1} parent=1 // pred_fallthru
      _
    // Predicated region
    $region14: #{tpu_custom_call.1} parent=1 // pred_check
      _
    $region15: #{tpu_custom_call.1} parent=1 // pred_check_branch
      %22 = sbr.rel (0) target = $region17
    $region16: #{tpu_custom_call.1} parent=1 // pred_region
      _
    $region17: #{tpu_custom_call.1} parent=1 // pred_fallthru
      _
    // Predicated region
    $region18: #{tpu_custom_call.1} parent=1 // pred_check
      _
    $region19: #{tpu_custom_call.1} parent=1 // pred_check_branch
      %24 = sbr.rel (0) target = $region21
    $region20: #{tpu_custom_call.1} parent=1 // pred_region
      %26 = vsyncadd [#allocation3], 0
      %s27 = sshll.u32 %s4, 4
      %s28 = int_to_ptr.hbm [resolvable:$true] %s27
      %s29 = sshll.u32 [#allocation2], 4
      %s30 = int_to_ptr.vmem [resolvable:$true] %s29
      %35 = dma.hbm_to_vmem [thread:$0]  %s28, 256, %s30, [#allocation3], 64, 64, 4
    $region21: #{tpu_custom_call.1} parent=1 // pred_fallthru
      _
    // Predicated region
    $region22: #{tpu_custom_call.1} parent=1 // pred_check
      _
    $region23: #{tpu_custom_call.1} parent=1 // pred_check_branch
      %37 = sbr.rel (0) target = $region25
    $region24: #{tpu_custom_call.1} parent=1 // pred_region
      _
    $region25: #{tpu_custom_call.1} parent=1 // pred_fallthru
      _
    // Predicated region
    $region26: #{tpu_custom_call.1} parent=1 // pred_check
      _
    $region27: #{tpu_custom_call.1} parent=1 // pred_check_branch
      %39 = sbr.rel (0) target = $region29
    $region28: #{tpu_custom_call.1} parent=1 // pred_region
      _
    $region29: #{tpu_custom_call.1} parent=1 // pred_fallthru
      _
    // Predicated region
    $region30: #{tpu_custom_call.1} parent=1 // pred_check
      _
    $region31: #{tpu_custom_call.1} parent=1 // pred_check_branch
      %41 = sbr.rel (0) target = $region33
    $region32: #{tpu_custom_call.1} parent=1 // pred_region
      _
    $region33: #{tpu_custom_call.1} parent=1 // pred_fallthru
      _
    // Predicated region
    $region34: #{tpu_custom_call.1} parent=1 // pred_check
      _
    $region35: #{tpu_custom_call.1} parent=1 // pred_check_branch
      %43 = sbr.rel (0) target = $region37
    $region36: #{tpu_custom_call.1} parent=1 // pred_region
      %45 = dma.done [#allocation3], 256
    $region37: #{tpu_custom_call.1} parent=1 // pred_fallthru
      _
    %v47 = vld [vmem:[%s0] sm:$0xff]
    %v48 = vld [vmem:[%s0 + $0x8] sm:$0xff]
    %v49 = vld [vmem:[%s1] sm:$0x3]
    %v50 = vld [vmem:[%s2] sm:$0x3]
    %v51 = vld [vmem:[%s3] sm:$0xf]
    %v52 = vld [vmem:[%s3 + $0x4] sm:$0xf]
    %v53 = vld [vmem:[%s3 + $0x8] sm:$0xf]
    %v54 = vld [vmem:[%s3 + $0xc] sm:$0xf]
    %v55 = vld [vmem:[%s3 + $0x10] sm:$0xf]
    %v56 = vld [vmem:[%s3 + $0x14] sm:$0xf]
    %v57 = vld [vmem:[%s3 + $0x18] sm:$0xf]
    %v58 = vld [vmem:[%s3 + $0x1c] sm:$0xf]
    %v59 = vld [vmem:[#allocation2] sm:$0xf]
    %v60 = vld [vmem:[#allocation2 + $0x4] sm:$0xf]
    %v61 = vld [vmem:[#allocation2 + $0x8] sm:$0xf]
    %v62 = vld [vmem:[#allocation2 + $0xc] sm:$0xf]
    %v63 = vld [vmem:[%s5] sm:$0x1]
    %v64 = vld [vmem:[%s6] sm:$0xf]
    %v65 = vld [vmem:[%s6 + $0x4] sm:$0xf]
    %v66 = vld [vmem:[%s6 + $0x8] sm:$0xf]
    %v67 = vld [vmem:[%s6 + $0xc] sm:$0xf]
    %v68 = vld [vmem:[%s6 + $0x10] sm:$0xf]
    %v69 = vld [vmem:[%s6 + $0x14] sm:$0xf]
    %v70 = vld [vmem:[%s6 + $0x18] sm:$0xf]
    %v71 = vld [vmem:[%s6 + $0x1c] sm:$0xf]
    %v72 = vld [vmem:[%s6 + $0x20] sm:$0xf]
    %v73 = vld [vmem:[%s6 + $0x24] sm:$0xf]
    %v74 = vld [vmem:[%s6 + $0x28] sm:$0xf]
    %v75 = vld [vmem:[%s6 + $0x2c] sm:$0xf]
    %v76 = vld [vmem:[%s6 + $0x30] sm:$0xf]
    %v77 = vld [vmem:[%s6 + $0x34] sm:$0xf]
    %v78 = vld [vmem:[%s6 + $0x38] sm:$0xf]
    %v79 = vld [vmem:[%s6 + $0x3c] sm:$0xf]
    %v80 = vld [vmem:[%s7] sm:$0x1]
    %v81 = vlaneseq
    %v82 = vand.u32 %v81, 127
    %83 = vset.pattern.permute.xlu0 0
    %84 = vperm.xlu0 %83, %v47
    %v85 = vpop.permute.xlu0 %84
    %86 = vset.pattern.permute.xlu0 0
    %87 = vperm.xlu0 %86, %v48
    %v88 = vpop.permute.xlu0 %87
    %vm89 = vcmp.eq.s32.totalorder %v85, %v82
    %vm90 = vcmp.eq.s32.totalorder %v88, %v82
    %v91 = vsel %vm89, 1.0, 0.0
    %v92 = vsel %vm90, 1.0, 0.0
    %v93 = vpack.c.bf16 %v92, %v91
    %v102 = vunpack.c.l.b16 %v51
    %v103 = vunpack.c.l.b16 %v52
    %v104 = vunpack.c.l.b16 %v53
    %v105 = vunpack.c.l.b16 %v54
    %v106 = vunpack.c.l.b16 %v55
    %v107 = vunpack.c.l.b16 %v56
    %v108 = vunpack.c.l.b16 %v57
    %v109 = vunpack.c.l.b16 %v58
    %v110 = vpack.c.b16 %v103, %v102
    %v111 = vpack.c.b16 %v105, %v104
    %v112 = vpack.c.b16 %v107, %v106
    %v113 = vpack.c.b16 %v109, %v108
    %vm118 = vcmask 523264
    %v120 = vsel %vm118, %v93, 0
    %122 = vmatpush.bf16.msra.mxu0 0
    %123 = vmatpush.bf16.msra.mxu0 0
    %124 = vmatpush.bf16.msra.mxu0 0
    %125 = vmatpush.bf16.msra.mxu0 0
    %126 = vmatpush.bf16.msra.mxu0 %v113
    %127 = vmatpush.bf16.msra.mxu0 %v112
    %128 = vmatpush.bf16.msra.mxu0 %v111
    %129 = vmatpush.bf16.msra.mxu0 %v110
    %130 = vmatmul.bf16.gmra.mxu0 %v120
    %v131 = vpop.f32.mrf.mxu0
    %v132 = vadd.f32 0.0, %v131
    %v133 = vpop.f32.mrf.mxu0
    %v134 = vadd.f32 0.0, %v133
    %135 = vdwg.mxu0
    %v136 = vpack.c.bf16 %v134, %v132
    %v138 = vperm.slane %v63, 0
    %v144 = vunpack.c.l.b16 %v59
    %v145 = vunpack.c.l.b16 %v60
    %v146 = vunpack.c.l.b16 %v61
    %v147 = vunpack.c.l.b16 %v62
    %v148 = vpack.c.b16 %v145, %v144
    %v149 = vpack.c.b16 %v147, %v146
    %vm152 = vcmask 261120
    %v154 = vsel %vm152, %v136, 0
    %156 = vmatpush.bf16.msra.mxu0 0
    %157 = vmatpush.bf16.msra.mxu0 0
    %158 = vmatpush.bf16.msra.mxu0 0
    %159 = vmatpush.bf16.msra.mxu0 0
    %160 = vmatpush.bf16.msra.mxu0 0
    %161 = vmatpush.bf16.msra.mxu0 0
    %162 = vmatpush.bf16.msra.mxu0 %v149
    %163 = vmatpush.bf16.msra.mxu0 %v148
    %164 = vmatmul.bf16.gmra.mxu0 %v154
    %v165 = vpop.f32.mrf.mxu0
    %v166 = vadd.f32 %v138, %v165
    %v167 = vpop.f32.mrf.mxu0
    %v168 = vadd.f32 %v138, %v167
    %169 = vdwg.mxu0
    %v170 = vtanh.pop %v166
    %v171 = vtanh.pop %v168
    %v172 = vperm.slane %v49, 0
    %v173 = vlaneseq
    %v174 = vshrl.u32 %v173, 7
    %176 = vset.pattern.permute.xlu0 %v174
    %177 = vperm.xlu0 %176, %v172
    %v178 = vpop.permute.xlu0 %177
    %v179 = vperm.slane %v49, 1
    %v180 = vlaneseq
    %v181 = vshrl.u32 %v180, 7
    %183 = vset.pattern.permute.xlu0 %v181
    %184 = vperm.xlu0 %183, %v179
    %v185 = vpop.permute.xlu0 %184
    %v186 = vmul.f32 %v170, %v178
    %v187 = vmul.f32 %v171, %v185
    %v188 = vrot.slane %v186, 4
    %v189 = vadd.f32 %v186, %v188
    %v190 = vrot.slane %v189, 2
    %v191 = vadd.f32 %v189, %v190
    %v192 = vrot.slane %v191, 1
    %v193 = vadd.f32 %v191, %v192
    %v194 = vrot.slane %v187, 4
    %v195 = vadd.f32 %v187, %v194
    %v196 = vrot.slane %v195, 2
    %v197 = vadd.f32 %v195, %v196
    %v198 = vrot.slane %v197, 1
    %v199 = vadd.f32 %v197, %v198
    %201 = vset.pattern.permute.xlu0 0
    %202 = vperm.xlu0 %201, %v50
    %v203 = vpop.permute.xlu0 %202
    %v204 = vrot.slane %v203, 1
    %v207 = vmul.f32 %v193, %v203
    %v208 = vmul.f32 %v199, %v204
    %v209 = vpack.c.bf16 %v207, %v207
    %v210 = vpack.c.bf16 %v208, %v208
    %v212 = vperm.slane %v80, 0
    %v216 = vunpack.c.l.b16 %v209
    %v217 = vunpack.c.l.b16 %v210
    %v218 = vrot.slane %v217, 7
    %vm219 = vcmask 1041409
    %v220 = vsel %vm219, %v218, %v216
    %v221 = vpack.c.b16 %v220, %v220
    %v239 = vunpack.c.l.b16 %v64
    %v240 = vunpack.c.l.b16 %v65
    %v241 = vunpack.c.l.b16 %v66
    %v242 = vunpack.c.l.b16 %v67
    %v243 = vunpack.c.l.b16 %v68
    %v244 = vunpack.c.l.b16 %v69
    %v245 = vunpack.c.l.b16 %v70
    %v246 = vunpack.c.l.b16 %v71
    %v247 = vunpack.c.l.b16 %v72
    %v248 = vunpack.c.l.b16 %v73
    %v249 = vunpack.c.l.b16 %v74
    %v250 = vunpack.c.l.b16 %v75
    %v251 = vunpack.c.l.b16 %v76
    %v252 = vunpack.c.l.b16 %v77
    %v253 = vunpack.c.l.b16 %v78
    %v254 = vunpack.c.l.b16 %v79
    %v255 = vpack.c.b16 %v240, %v239
    %v256 = vpack.c.b16 %v242, %v241
    %v257 = vpack.c.b16 %v244, %v243
    %v258 = vpack.c.b16 %v246, %v245
    %v259 = vpack.c.b16 %v248, %v247
    %v260 = vpack.c.b16 %v250, %v249
    %v261 = vpack.c.b16 %v252, %v251
    %v262 = vpack.c.b16 %v254, %v253
    %271 = vmatpush.bf16.msra.mxu0 %v262
    %272 = vmatpush.bf16.msra.mxu0 %v261
    %273 = vmatpush.bf16.msra.mxu0 %v260
    %274 = vmatpush.bf16.msra.mxu0 %v259
    %275 = vmatpush.bf16.msra.mxu0 %v258
    %276 = vmatpush.bf16.msra.mxu0 %v257
    %277 = vmatpush.bf16.msra.mxu0 %v256
    %278 = vmatpush.bf16.msra.mxu0 %v255
    %279 = vmatmul.bf16.gmra.mxu0 %v221
    %v280 = vpop.f32.mrf.mxu0
    %v281 = vadd.f32 %v212, %v280
    %v282 = vpop.f32.mrf.mxu0
    %283 = vdwg.mxu0
    %v284 = vmul.f32 %v281, %v281
    %vm285 = vcmask 1041408
    %v286 = vsel %vm285, %v284, 0.0
    %287 = vadd.xlane.f32.xlu0 %v286
    %v288 = vpop.xlane.xlu0 %287
    %v289 = vmax.f32 %v288, 1e-24
    %v290 = vrsqrt.pop %v289
    %v291 = vmul.f32 %v290, %v289
    %v292 = vmul.f32 %v291, %v290
    %v293 = vmul.f32 0.5, %v292
    %v294 = vsub.f32 1.5, %v293
    %v295 = vmul.f32 %v290, %v294
    %vm296 = vweird.f32 %v289
    %vm297 = vweird.f32 %v290
    %vm298 = vmor %vm296, %vm297
    %v299 = vsel %vm298, %v290, %v295
    %v300 = vmul.f32 %v281, %v299
    %301 = vst [vmem:[#allocation5] sm:$0x3] %v300
    // Predicated region
    $region38: #{tpu_custom_call.1} parent=1 // pred_check
      _
    $region39: #{tpu_custom_call.1} parent=1 // pred_check_branch
      %303 = sbr.rel (0) target = $region41
    $region40: #{tpu_custom_call.1} parent=1 // pred_region
      %305 = vsyncadd [#allocation4], 0
      %s307 = sshll.u32 [#allocation5], 4
      %s308 = int_to_ptr.vmem [resolvable:$true] %s307
      %s309 = sshll.u32 %s8, 4
      %s310 = int_to_ptr.hbm [resolvable:$true] %s309
      %312 = dma.vmem_to_hbm [thread:$0]  %s308, 32, %s310, [#allocation4]
    $region41: #{tpu_custom_call.1} parent=1 // pred_fallthru
      _
    // Predicated region
    $region42: #{tpu_custom_call.1} parent=1 // pred_check
      _
    $region43: #{tpu_custom_call.1} parent=1 // pred_check_branch
      %314 = sbr.rel (0) target = $region45
    $region44: #{tpu_custom_call.1} parent=1 // pred_region
      %316 = dma.done [#allocation4], 32
    $region45: #{tpu_custom_call.1} parent=1 // pred_fallthru
      _
    %317 = vsyncpa [#allocation3], 1
    %318 = vsyncpa [#allocation4], 1

</llo_original>
